<compile_context>
chip_gen: v7x
topology: tpu7x:2x2x1
jax: 0.10.0
libtpu: 0.0.40
codegen_flags: <defaults>
</compile_context>

<pallas_src>
import functools

import jax
import jax.numpy as jnp
from jax.experimental import pallas as pl
from jax.experimental.pallas import tpu as pltpu


def _round_up(x, m):
    return ((x + m - 1) // m) * m


def _vmem_capacity_bytes():
    try:
        info = pltpu.get_tpu_info()
        return int(getattr(info, "vmem_capacity_bytes", 64 * 1024 * 1024))
    except Exception:
        return 64 * 1024 * 1024  # v7x-safe fallback


def _pff_kernel(x_ref, w1_ref, b1_ref, w2_ref, b2_ref, o_ref):
    """out = relu(x @ W1 + b1) @ W2 + b2 + x  for one row tile."""
    x = x_ref[...]
    # Feed the MXU in the weight dtype (no-op for f32 weights; bf16 weights ->
    # bf16 x bf16 matmul), accumulating in f32.  Bias/ReLU/residual stay in f32.
    h = jnp.dot(x.astype(w1_ref.dtype), w1_ref[...],
                preferred_element_type=jnp.float32)
    h = jnp.maximum(h + b1_ref[...], 0.0)
    y = jnp.dot(h.astype(w2_ref.dtype), w2_ref[...],
                preferred_element_type=jnp.float32) + b2_ref[...]
    # dropout1/2/3 are identity at inference time.
    o_ref[...] = (y + x.astype(jnp.float32)).astype(o_ref.dtype)


@functools.partial(jax.jit, static_argnames=("tile_m", "compute_dtype"))
def pointwise_feedforward(x, w1, b1, w2, b2, *, tile_m=None, compute_dtype=None):
    """x: (B, L, H).  w1/w2: (H, H) already transposed to (in, out).  b1/b2: (1, H) or (H,).
    Returns (B, L, H) with the same dtype as x."""
    B, L, H = x.shape
    rows = B * L

    if compute_dtype is not None:  # optional bf16 weights / MXU operands (halves W traffic)
        w1 = w1.astype(compute_dtype)
        w2 = w2.astype(compute_dtype)
    b1 = b1.reshape(1, H).astype(jnp.float32)
    b2 = b2.reshape(1, H).astype(jnp.float32)
    x2 = x.reshape(rows, H)

    # ---- lane-dense token packing for small H dividing 128 -------------------
    # (rows, H) -> (rows/k, k*H) with k*H = 128, block-diagonal (128,128) weights.
    pack = 128 // H if (H < 128 and 128 % H == 0 and rows % (128 // H) == 0) else 1
    if pack > 1:
        R, C = rows // pack, H * pack
        x2 = x2.reshape(R, C)  # row-major -> free reshape, no data movement

        def blockdiag(w):
            eye = jnp.eye(pack, dtype=w.dtype)
            return (eye[:, None, :, None] * w[None, :, None, :]).reshape(C, C)

        w1c, w2c = blockdiag(w1), blockdiag(w2)
        b1c, b2c = jnp.tile(b1, (1, pack)), jnp.tile(b2, (1, pack))
    else:
        R, C = rows, H
        w1c, w2c, b1c, b2c = w1, w2, b1, b2

    itemsize = jnp.dtype(x.dtype).itemsize
    w_itemsize = jnp.dtype(w1c.dtype).itemsize

    # ---- generation-aware VMEM sizing ----------------------------------------
    vmem_cap = _vmem_capacity_bytes()                     # 128 MiB v5e/v6e, 64 MiB v7x
    vmem_limit = min(int(vmem_cap * 3 // 4), 112 * 1024 * 1024)

    # Weights/biases are grid-invariant; single-buffer them once the double-buffer
    # would waste meaningful VMEM (review item: pl.Buffered(1) on constant operands).
    weight_bytes = 2 * C * C * w_itemsize + 2 * C * 4
    single_buffer_weights = 2 * weight_bytes >= vmem_limit // 8
    weight_bufs = 1 if single_buffer_weights else 2
    # TODO(synk): when weight_bufs * weight_bytes no longer fits (C >~ 2048 bf16 on
    # v7x), tile N (and K with an f32 VMEM accumulator + an "arbitrary" reduction
    # axis) instead of keeping W1/W2 fully resident.

    # Per-row VMEM: x-in + out double-buffered, plus f32 h / y / residual temporaries.
    per_row = 2 * 2 * C * itemsize + 3 * C * 4
    avail = vmem_limit - weight_bufs * weight_bytes - (2 << 20)
    max_tm = max(32, (max(avail, 0) // per_row // 32) * 32)

    tm = 2048 if tile_m is None else int(tile_m)
    tm = max(32, (tm // 32) * 32)          # multiple of 32: safe for bf16/int8/fp8 packing
    tm = min(tm, max_tm)
    if R >= 64:
        # Keep >= 2 grid steps so dimension_semantics=("parallel",) can shard the row
        # axis across both TensorCores on v7x.
        tm = min(tm, _round_up(-(-R // 2), 32))
    if tm >= R:
        tm = R                              # single full block (always a legal block shape)
    grid = (pl.cdiv(R, tm),)                # ragged last block: Pallas masks the overhang

    cost = pl.CostEstimate(
        flops=4 * R * C * C,                                  # two MxKxN matmuls
        transcendentals=0,
        bytes_accessed=(2 * R * C * itemsize                  # read x + write out
                        + 2 * C * C * w_itemsize              # W1 + W2
                        + 2 * C * 4),                         # biases (f32)
    )

    x_spec = pl.BlockSpec((tm, C), lambda i: (i, 0))
    o_spec = pl.BlockSpec((tm, C), lambda i: (i, 0))
    if single_buffer_weights:
        w1_spec = pl.BlockSpec((C, C), lambda i: (0, 0), pipeline_mode=pl.Buffered(1))
        w2_spec = pl.BlockSpec((C, C), lambda i: (0, 0), pipeline_mode=pl.Buffered(1))
    else:
        w1_spec = pl.BlockSpec((C, C), lambda i: (0, 0))
        w2_spec = pl.BlockSpec((C, C), lambda i: (0, 0))
    b1_spec = pl.BlockSpec((1, C), lambda i: (0, 0))
    b2_spec = pl.BlockSpec((1, C), lambda i: (0, 0))

    out2 = pl.pallas_call(
        _pff_kernel,
        out_shape=jax.ShapeDtypeStruct((R, C), x.dtype),
        grid=grid,
        in_specs=[x_spec, w1_spec, b1_spec, w2_spec, b2_spec],
        out_specs=o_spec,
        compiler_params=pltpu.CompilerParams(
            dimension_semantics=("parallel",),       # shard row tiles over TensorCores
            vmem_limit_bytes=int(vmem_limit),
        ),
        cost_estimate=cost,
    )(x2, w1c, b1c, w2c, b2c)

    return out2.reshape(B, L, H)


def init_params(key, hidden_units):
    """Deterministic init matching Conv1d(H, H, kernel_size=1) parameter shapes.

    PyTorch conv1d weight shape is (out, in, 1); we store the (in, out) transpose
    so the kernel can do x @ W directly."""
    k1, k2, k3, k4 = jax.random.split(key, 4)
    bound = 1.0 / (hidden_units ** 0.5)  # torch default uniform bound for k=1
    w1 = jax.random.uniform(k1, (hidden_units, hidden_units), jnp.float32, -bound, bound)
    b1 = jax.random.uniform(k2, (1, hidden_units), jnp.float32, -bound, bound)
    w2 = jax.random.uniform(k3, (hidden_units, hidden_units), jnp.float32, -bound, bound)
    b2 = jax.random.uniform(k4, (1, hidden_units), jnp.float32, -bound, bound)
    return w1, b1, w2, b2


def reference(x, w1, b1, w2, b2):
    h = jnp.maximum(jnp.einsum("blh,ho->blo", x, w1) + b1.reshape(-1), 0.0)
    y = jnp.einsum("blh,ho->blo", h, w2) + b2.reshape(-1)
    return y + x


if __name__ == "__main__":
    key = jax.random.PRNGKey(0)
    kx, kp, kx2, kp2 = jax.random.split(key, 4)

    # Case 1: SASRec-style small hidden size dividing 128 -> lane-dense token
    # packing path (4 tokens per 128-lane row, block-diagonal weights).
    B, L, H = 2, 8, 32
    x = jax.random.normal(kx, (B, L, H), jnp.float32)
    w1, b1, w2, b2 = init_params(kp, H)
    out = jax.block_until_ready(pointwise_feedforward(x, w1, b1, w2, b2))
    ref = reference(x, w1, b1, w2, b2)
    assert out.shape == (B, L, H)
    assert jnp.allclose(out, ref, atol=1e-5, rtol=1e-5), "mismatch vs reference (packed path)"

    # Case 2: hidden size not dividing 128 and a ragged row count -> unpadded path
    # (full-H lane blocks, masked last row block).
    B2, L2, H2 = 4, 33, 50
    x_b = jax.random.normal(kx2, (B2, L2, H2), jnp.float32)
    params_b = init_params(kp2, H2)
    out_b = jax.block_until_ready(pointwise_feedforward(x_b, *params_b, tile_m=96))
    ref_b = reference(x_b, *params_b)
    assert out_b.shape == (B2, L2, H2)
    assert jnp.allclose(out_b, ref_b, atol=1e-4, rtol=1e-4), "mismatch vs reference (unpadded path)"

    print("KERNEL_OK")
</pallas_src>

<mosaic_0001>
module attributes {stable_mosaic.version = 11 : i64} {
  func.func @_pff_kernel(%arg0: i32, %arg1: memref<4x128xf32, #tpu.memory_space<vmem>>, %arg2: memref<128x128xf32, #tpu.memory_space<vmem>>, %arg3: memref<1x128xf32, #tpu.memory_space<vmem>>, %arg4: memref<128x128xf32, #tpu.memory_space<vmem>>, %arg5: memref<1x128xf32, #tpu.memory_space<vmem>>, %arg6: memref<4x128xf32, #tpu.memory_space<vmem>>) attributes {dimension_semantics = [#tpu.dimension_semantics<parallel>], iteration_bounds = array<i64: 1>, scalar_prefetch = 0 : i64, scratch_operands = 0 : i64, tpu.core_type = #tpu.core_type<tc>, window_params = [{transform_indices = @transform_0, window_bounds = array<i64: 4, 128>}, {pipeline_mode = #tpu.pipeline_mode<synchronous>, transform_indices = @transform_1, window_bounds = array<i64: 128, 128>}, {pipeline_mode = #tpu.pipeline_mode<synchronous>, transform_indices = @transform_2, window_bounds = array<i64: 1, 128>}, {pipeline_mode = #tpu.pipeline_mode<synchronous>, transform_indices = @transform_3, window_bounds = array<i64: 128, 128>}, {pipeline_mode = #tpu.pipeline_mode<synchronous>, transform_indices = @transform_4, window_bounds = array<i64: 1, 128>}, {transform_indices = @transform_5, window_bounds = array<i64: 4, 128>}]} {
    %c0 = arith.constant 0 : index
    %c0_0 = arith.constant 0 : index
    %0 = vector.load %arg1[%c0, %c0_0] : memref<4x128xf32, #tpu.memory_space<vmem>>, vector<4x128xf32>
    %c0_1 = arith.constant 0 : index
    %c0_2 = arith.constant 0 : index
    %1 = vector.load %arg2[%c0_1, %c0_2] : memref<128x128xf32, #tpu.memory_space<vmem>>, vector<128x128xf32>
    %cst = arith.constant dense<0.000000e+00> : vector<4x128xf32>
    %2 = tpu.matmul %0, %1, %cst {dimension_numbers = #tpu.dot_dimension_numbers<[1], [0], [0], [1], [0, 0, 1, 1], [], []>} : vector<4x128xf32>, vector<128x128xf32>, vector<4x128xf32> -> vector<4x128xf32>
    %c0_3 = arith.constant 0 : index
    %c0_4 = arith.constant 0 : index
    %3 = vector.load %arg3[%c0_3, %c0_4] : memref<1x128xf32, #tpu.memory_space<vmem>>, vector<1x128xf32>
    %4 = vector.broadcast %3 : vector<1x128xf32> to vector<4x128xf32>
    %5 = arith.addf %2, %4 : vector<4x128xf32>
    %cst_5 = arith.constant 0.000000e+00 : f32
    %6 = vector.broadcast %cst_5 : f32 to vector<4x128xf32>
    %7 = arith.maximumf %5, %6 : vector<4x128xf32>
    %c0_6 = arith.constant 0 : index
    %c0_7 = arith.constant 0 : index
    %8 = vector.load %arg4[%c0_6, %c0_7] : memref<128x128xf32, #tpu.memory_space<vmem>>, vector<128x128xf32>
    %cst_8 = arith.constant dense<0.000000e+00> : vector<4x128xf32>
    %9 = tpu.matmul %7, %8, %cst_8 {dimension_numbers = #tpu.dot_dimension_numbers<[1], [0], [0], [1], [0, 0, 1, 1], [], []>} : vector<4x128xf32>, vector<128x128xf32>, vector<4x128xf32> -> vector<4x128xf32>
    %c0_9 = arith.constant 0 : index
    %c0_10 = arith.constant 0 : index
    %10 = vector.load %arg5[%c0_9, %c0_10] : memref<1x128xf32, #tpu.memory_space<vmem>>, vector<1x128xf32>
    %11 = vector.broadcast %10 : vector<1x128xf32> to vector<4x128xf32>
    %12 = arith.addf %9, %11 : vector<4x128xf32>
    %13 = arith.addf %12, %0 : vector<4x128xf32>
    %c0_11 = arith.constant 0 : index
    %c0_12 = arith.constant 0 : index
    %14 = vector.load %arg6[%c0_11, %c0_12] : memref<4x128xf32, #tpu.memory_space<vmem>>, vector<4x128xf32>
    tpu.vector_store %arg6[%c0_11, %c0_12], %13 {strides = array<i32>} : memref<4x128xf32, #tpu.memory_space<vmem>>, vector<4x128xf32>,
    return
  }
  func.func @transform_0(%arg0: i32) -> (i32, i32) {
    %c0_i32 = arith.constant 0 : i32
    %c0_i32_0 = arith.constant 0 : i32
    return %arg0, %c0_i32 : i32, i32
  }
  func.func @transform_1(%arg0: i32) -> (i32, i32) {
    %c0_i32 = arith.constant 0 : i32
    %c0_i32_0 = arith.constant 0 : i32
    %c0_i32_1 = arith.constant 0 : i32
    return %c0_i32, %c0_i32_0 : i32, i32
  }
  func.func @transform_2(%arg0: i32) -> (i32, i32) {
    %c0_i32 = arith.constant 0 : i32
    %c0_i32_0 = arith.constant 0 : i32
    %c0_i32_1 = arith.constant 0 : i32
    return %c0_i32, %c0_i32_0 : i32, i32
  }
  func.func @transform_3(%arg0: i32) -> (i32, i32) {
    %c0_i32 = arith.constant 0 : i32
    %c0_i32_0 = arith.constant 0 : i32
    %c0_i32_1 = arith.constant 0 : i32
    return %c0_i32, %c0_i32_0 : i32, i32
  }
  func.func @transform_4(%arg0: i32) -> (i32, i32) {
    %c0_i32 = arith.constant 0 : i32
    %c0_i32_0 = arith.constant 0 : i32
    %c0_i32_1 = arith.constant 0 : i32
    return %c0_i32, %c0_i32_0 : i32, i32
  }
  func.func @transform_5(%arg0: i32) -> (i32, i32) {
    %c0_i32 = arith.constant 0 : i32
    %c0_i32_0 = arith.constant 0 : i32
    return %arg0, %c0_i32 : i32, i32
  }
}

</mosaic_0001>

<llo_original>
// kernel: pointwise_feedforward.1
$region0: #{pointwise_feedforward.1}
  #allocation0 [shape = 'u32[]', space=smem, size = 0x4, offset = 0x4, fixed_abs, tag = 'smem constant byte address 0x4 - core index']
  #allocation1 [shape = 'u32[144,128]{1,0:T(1,128)}', space=vmem, size = 0x12000, scoped, tag = 'internal scratch']
  %s0 = inlined_call_operand.vmem [shape: f32[4,128], index: 0, kind: input, shape index: {}]
  %s1 = inlined_call_operand.vmem [shape: f32[128,128], index: 1, kind: input, shape index: {}]
  %s2 = inlined_call_operand.vmem [shape: f32[1,128], index: 2, kind: input, shape index: {}]
  %s3 = inlined_call_operand.vmem [shape: f32[128,128], index: 3, kind: input, shape index: {}]
  %s4 = inlined_call_operand.vmem [shape: f32[1,128], index: 4, kind: input, shape index: {}]
  %s5 = inlined_call_operand.vmem [shape: f32[4,128], index: 5, kind: output, shape index: {}]
  %s6 = sld [smem:[#allocation0]]
  $region30: #{pointwise_feedforward.1} parent=0
    _
  %s8 = ssub.s32 1, %s6
  %s9 = scalar_select 0, %s8, %s6
  // Predicated region
  $region2: #{pointwise_feedforward.1} parent=0 // pred_check
    _
  $region3: #{pointwise_feedforward.1} parent=0 // pred_check_branch
    %11 = sbr.rel (0) target = $region5
  $region4: #{pointwise_feedforward.1} parent=0 // pred_region
    _
  $region5: #{pointwise_feedforward.1} parent=0 // pred_fallthru
    _
  // Predicated region
  $region6: #{pointwise_feedforward.1} parent=0 // pred_check
    _
  $region7: #{pointwise_feedforward.1} parent=0 // pred_check_branch
    %13 = sbr.rel (0) target = $region9
  $region8: #{pointwise_feedforward.1} parent=0 // pred_region
    _
  $region9: #{pointwise_feedforward.1} parent=0 // pred_fallthru
    _
  // Predicated region
  $region10: #{pointwise_feedforward.1} parent=0 // pred_check
    _
  $region11: #{pointwise_feedforward.1} parent=0 // pred_check_branch
    %15 = sbr.rel (0) target = $region13
  $region12: #{pointwise_feedforward.1} parent=0 // pred_region
    _
  $region13: #{pointwise_feedforward.1} parent=0 // pred_fallthru
    _
  // Predicated region
  $region14: #{pointwise_feedforward.1} parent=0 // pred_check
    _
  $region15: #{pointwise_feedforward.1} parent=0 // pred_check_branch
    %17 = sbr.rel (0) target = $region17
  $region16: #{pointwise_feedforward.1} parent=0 // pred_region
    _
  $region17: #{pointwise_feedforward.1} parent=0 // pred_fallthru
    _
  // Predicated region
  $region18: #{pointwise_feedforward.1} parent=0 // pred_check
    _
  $region19: #{pointwise_feedforward.1} parent=0 // pred_check_branch
    %19 = sbr.rel (0) target = $region21
  $region20: #{pointwise_feedforward.1} parent=0 // pred_region
    _
  $region21: #{pointwise_feedforward.1} parent=0 // pred_fallthru
    _
  %v20 = vld [vmem:[%s0] sm:$0xf]
  %v21 = vld [vmem:[%s1] sm:$0xff]
  %v22 = vld [vmem:[%s1 + $0x8] sm:$0xff]
  %v23 = vld [vmem:[%s1 + $0x10] sm:$0xff]
  %v24 = vld [vmem:[%s1 + $0x18] sm:$0xff]
  %v25 = vld [vmem:[%s1 + $0x20] sm:$0xff]
  %v26 = vld [vmem:[%s1 + $0x28] sm:$0xff]
  %v27 = vld [vmem:[%s1 + $0x30] sm:$0xff]
  %v28 = vld [vmem:[%s1 + $0x38] sm:$0xff]
  %v29 = vld [vmem:[%s1 + $0x40] sm:$0xff]
  %v30 = vld [vmem:[%s1 + $0x48] sm:$0xff]
  %v31 = vld [vmem:[%s1 + $0x50] sm:$0xff]
  %v32 = vld [vmem:[%s1 + $0x58] sm:$0xff]
  %v33 = vld [vmem:[%s1 + $0x60] sm:$0xff]
  %v34 = vld [vmem:[%s1 + $0x68] sm:$0xff]
  %v35 = vld [vmem:[%s1 + $0x70] sm:$0xff]
  %v36 = vld [vmem:[%s1 + $0x78] sm:$0xff]
  %v37 = vld [vmem:[%s2] sm:$0x1]
  %v39 = vlaneseq
  %v40 = vshrl.u32 %v39, 7
  %v41 = vsub.s32 0, %v40
  %v42 = vrot.slane %v37, %v41
  %44 = vmatprep.subr.mxu0 0.0
  %45 = vmatpush1.msra.mxu0 %v21
  %46 = vmatprep.subr.mxu0 0.0
  %47 = vmatpush1.msra.mxu0 %v22
  %48 = vmatprep.subr.mxu0 0.0
  %49 = vmatpush1.msra.mxu0 %v23
  %50 = vmatprep.subr.mxu0 0.0
  %51 = vmatpush1.msra.mxu0 %v24
  %52 = vmatprep.subr.mxu0 0.0
  %53 = vmatpush1.msra.mxu0 %v25
  %54 = vmatprep.subr.mxu0 0.0
  %55 = vmatpush1.msra.mxu0 %v26
  %56 = vmatprep.subr.mxu0 0.0
  %57 = vmatpush1.msra.mxu0 %v27
  %58 = vmatprep.subr.mxu0 0.0
  %59 = vmatpush1.msra.mxu0 %v28
  %60 = vmatprep.subr.mxu0 0.0
  %61 = vmatpush1.msra.mxu0 %v29
  %62 = vmatprep.subr.mxu0 0.0
  %63 = vmatpush1.msra.mxu0 %v30
  %64 = vmatprep.subr.mxu0 0.0
  %65 = vmatpush1.msra.mxu0 %v31
  %66 = vmatprep.subr.mxu0 0.0
  %67 = vmatpush1.msra.mxu0 %v32
  %68 = vmatprep.subr.mxu0 0.0
  %69 = vmatpush1.msra.mxu0 %v33
  %70 = vmatprep.subr.mxu0 0.0
  %71 = vmatpush1.msra.mxu0 %v34
  %72 = vmatprep.subr.mxu0 0.0
  %73 = vmatpush1.msra.mxu0 %v35
  %74 = vmatprep.subr.mxu0 0.0
  %75 = vmatpush1.msra.mxu0 %v36
  %76 = vmatprep.subr.mxu0 0.0
  %77 = vmatpush1.msra.mxu0 0.0
  %78 = vmatprep.subr.mxu0 0.0
  %79 = vmatpush1.msra.mxu0 0.0
  %80 = vmatprep.subr.mxu0 0.0
  %81 = vmatpush1.msra.mxu0 0.0
  %82 = vmatprep.subr.mxu0 0.0
  %83 = vmatpush1.msra.mxu0 0.0
  %84 = vmatprep.subr.mxu0 0.0
  %85 = vmatpush1.msra.mxu0 0.0
  %86 = vmatprep.subr.mxu0 0.0
  %87 = vmatpush1.msra.mxu0 0.0
  %88 = vmatprep.subr.mxu0 0.0
  %89 = vmatpush1.msra.mxu0 0.0
  %90 = vmatprep.subr.mxu0 0.0
  %91 = vmatpush1.msra.mxu0 0.0
  %92 = vmatprep.subr.mxu0 0.0
  %93 = vmatpush1.msra.mxu0 0.0
  %94 = vmatprep.subr.mxu0 0.0
  %95 = vmatpush1.msra.mxu0 0.0
  %96 = vmatprep.subr.mxu0 0.0
  %97 = vmatpush1.msra.mxu0 0.0
  %98 = vmatprep.subr.mxu0 0.0
  %99 = vmatpush1.msra.mxu0 0.0
  %100 = vmatprep.subr.mxu0 0.0
  %101 = vmatpush1.msra.mxu0 0.0
  %102 = vmatprep.subr.mxu0 0.0
  %103 = vmatpush1.msra.mxu0 0.0
  %104 = vmatprep.subr.mxu0 0.0
  %105 = vmatpush1.msra.mxu0 0.0
  %106 = vmatprep.subr.mxu0 0.0
  %107 = vmatpush1.msra.mxu0 0.0
  %108 = vmatprep.mubr.f32.mxu0 0.0
  %109 = vmatmul.mubr.f32.gmra.mrb[0].mxu0 %v20
  %v110 = vpop.f32.mrb[0].mxu0
  %v111 = vadd.f32 %v42, %v110
  %v112 = vpop.f32.mrb[0].mxu0
  %113 = vdwg.mxu0
  %v114 = vmax.f32 %v111, 0.0
  %v115 = vld [vmem:[%s3] sm:$0xff]
  %v116 = vld [vmem:[%s3 + $0x8] sm:$0xff]
  %v117 = vld [vmem:[%s3 + $0x10] sm:$0xff]
  %v118 = vld [vmem:[%s3 + $0x18] sm:$0xff]
  %v119 = vld [vmem:[%s3 + $0x20] sm:$0xff]
  %v120 = vld [vmem:[%s3 + $0x28] sm:$0xff]
  %v121 = vld [vmem:[%s3 + $0x30] sm:$0xff]
  %v122 = vld [vmem:[%s3 + $0x38] sm:$0xff]
  %v123 = vld [vmem:[%s3 + $0x40] sm:$0xff]
  %v124 = vld [vmem:[%s3 + $0x48] sm:$0xff]
  %v125 = vld [vmem:[%s3 + $0x50] sm:$0xff]
  %v126 = vld [vmem:[%s3 + $0x58] sm:$0xff]
  %v127 = vld [vmem:[%s3 + $0x60] sm:$0xff]
  %v128 = vld [vmem:[%s3 + $0x68] sm:$0xff]
  %v129 = vld [vmem:[%s3 + $0x70] sm:$0xff]
  %v130 = vld [vmem:[%s3 + $0x78] sm:$0xff]
  %v131 = vld [vmem:[%s4] sm:$0x1]
  %v133 = vlaneseq
  %v134 = vshrl.u32 %v133, 7
  %v135 = vsub.s32 0, %v134
  %v136 = vrot.slane %v131, %v135
  %138 = vmatprep.subr.mxu0 0.0
  %139 = vmatpush1.msra.mxu0 %v115
  %140 = vmatprep.subr.mxu0 0.0
  %141 = vmatpush1.msra.mxu0 %v116
  %142 = vmatprep.subr.mxu0 0.0
  %143 = vmatpush1.msra.mxu0 %v117
  %144 = vmatprep.subr.mxu0 0.0
  %145 = vmatpush1.msra.mxu0 %v118
  %146 = vmatprep.subr.mxu0 0.0
  %147 = vmatpush1.msra.mxu0 %v119
  %148 = vmatprep.subr.mxu0 0.0
  %149 = vmatpush1.msra.mxu0 %v120
  %150 = vmatprep.subr.mxu0 0.0
  %151 = vmatpush1.msra.mxu0 %v121
  %152 = vmatprep.subr.mxu0 0.0
  %153 = vmatpush1.msra.mxu0 %v122
  %154 = vmatprep.subr.mxu0 0.0
  %155 = vmatpush1.msra.mxu0 %v123
  %156 = vmatprep.subr.mxu0 0.0
  %157 = vmatpush1.msra.mxu0 %v124
  %158 = vmatprep.subr.mxu0 0.0
  %159 = vmatpush1.msra.mxu0 %v125
  %160 = vmatprep.subr.mxu0 0.0
  %161 = vmatpush1.msra.mxu0 %v126
  %162 = vmatprep.subr.mxu0 0.0
  %163 = vmatpush1.msra.mxu0 %v127
  %164 = vmatprep.subr.mxu0 0.0
  %165 = vmatpush1.msra.mxu0 %v128
  %166 = vmatprep.subr.mxu0 0.0
  %167 = vmatpush1.msra.mxu0 %v129
  %168 = vmatprep.subr.mxu0 0.0
  %169 = vmatpush1.msra.mxu0 %v130
  %170 = vmatprep.subr.mxu0 0.0
  %171 = vmatpush1.msra.mxu0 0.0
  %172 = vmatprep.subr.mxu0 0.0
  %173 = vmatpush1.msra.mxu0 0.0
  %174 = vmatprep.subr.mxu0 0.0
  %175 = vmatpush1.msra.mxu0 0.0
  %176 = vmatprep.subr.mxu0 0.0
  %177 = vmatpush1.msra.mxu0 0.0
  %178 = vmatprep.subr.mxu0 0.0
  %179 = vmatpush1.msra.mxu0 0.0
  %180 = vmatprep.subr.mxu0 0.0
  %181 = vmatpush1.msra.mxu0 0.0
  %182 = vmatprep.subr.mxu0 0.0
  %183 = vmatpush1.msra.mxu0 0.0
  %184 = vmatprep.subr.mxu0 0.0
  %185 = vmatpush1.msra.mxu0 0.0
  %186 = vmatprep.subr.mxu0 0.0
  %187 = vmatpush1.msra.mxu0 0.0
  %188 = vmatprep.subr.mxu0 0.0
  %189 = vmatpush1.msra.mxu0 0.0
  %190 = vmatprep.subr.mxu0 0.0
  %191 = vmatpush1.msra.mxu0 0.0
  %192 = vmatprep.subr.mxu0 0.0
  %193 = vmatpush1.msra.mxu0 0.0
  %194 = vmatprep.subr.mxu0 0.0
  %195 = vmatpush1.msra.mxu0 0.0
  %196 = vmatprep.subr.mxu0 0.0
  %197 = vmatpush1.msra.mxu0 0.0
  %198 = vmatprep.subr.mxu0 0.0
  %199 = vmatpush1.msra.mxu0 0.0
  %200 = vmatprep.subr.mxu0 0.0
  %201 = vmatpush1.msra.mxu0 0.0
  %202 = vmatprep.mubr.f32.mxu0 0.0
  %203 = vmatmul.mubr.f32.gmra.mrb[0].mxu0 %v114
  %v204 = vpop.f32.mrb[0].mxu0
  %v205 = vadd.f32 %v136, %v204
  %v206 = vpop.f32.mrb[0].mxu0
  %207 = vdwg.mxu0
  %v208 = vadd.f32 %v205, %v20
  %209 = vst [vmem:[%s5] sm:$0xf] %v208
  // Predicated region
  $region22: #{pointwise_feedforward.1} parent=0 // pred_check
    _
  $region23: #{pointwise_feedforward.1} parent=0 // pred_check_branch
    %211 = sbr.rel (0) target = $region25
  $region24: #{pointwise_feedforward.1} parent=0 // pred_region
    _
  $region25: #{pointwise_feedforward.1} parent=0 // pred_fallthru
    _
  // Predicated region
  $region26: #{pointwise_feedforward.1} parent=0 // pred_check
    _
  $region27: #{pointwise_feedforward.1} parent=0 // pred_check_branch
    %213 = sbr.rel (0) target = $region29
  $region28: #{pointwise_feedforward.1} parent=0 // pred_region
    _
  $region29: #{pointwise_feedforward.1} parent=0 // pred_fallthru
    _

</llo_original>
